<compile_context>
chip_gen: v7x
topology: tpu7x:2x2x1
jax: 0.10.0
libtpu: 0.0.40
codegen_flags: <defaults>
</compile_context>

<pallas_src>
import jax
import jax.numpy as jnp
from jax.experimental import pallas as pl
from jax.experimental.pallas import tpu as pltpu


def _round_up(x: int, m: int) -> int:
    return (x + m - 1) // m * m


def _embed_kernel(x_ref, w_ref, o_ref):
    # x_ref: (ts, K)   w_ref: (K, N_pad)   o_ref: (ts, N_pad)
    # One MXU dot + one unmasked lane-dense store per tile (bias folded in W).
    o_ref[...] = jnp.dot(
        x_ref[...], w_ref[...], preferred_element_type=jnp.float32
    ).astype(o_ref.dtype)


def combined_embed(x, w, b):
    """x: [B, S, c_in] @ w: [c_in, d] + b: [d]  ->  [S, B, d] (transpose fused)."""
    B, S, c_in = x.shape
    d = w.shape[1]
    lane = 128

    K = B * c_in + 1                   # +1: constant-1 channel carries the bias
    N = B * d
    N_pad = _round_up(N, lane)         # lane-dense (unmasked) output stores
    K_lane = _round_up(K, lane)        # lane padding of the x block in VMEM

    # ---- wrapper-side prep (tiny tensors: B*S*c_in and K*N_pad elements) ----
    # [B, S, c] -> [S, B*c], plus a ones column for the bias.
    x2 = jnp.transpose(x, (1, 0, 2)).reshape(S, B * c_in)
    x2 = jnp.concatenate([x2, jnp.ones((S, 1), x.dtype)], axis=1)     # (S, K)

    # Block-diagonal weight with fused bias row, zero-padded to N_pad lanes.
    eye = jnp.eye(B, dtype=w.dtype)                                    # (B, B)
    w_diag = (eye[:, None, :, None] * w[None, :, None, :]).reshape(B * c_in, N)
    bias_row = jnp.tile(b.reshape(1, d), (1, B))                       # (1, N)
    w_blk = jnp.concatenate([w_diag, bias_row], axis=0)                # (K, N)
    if N_pad != N:
        w_blk = jnp.pad(w_blk, ((0, 0), (0, N_pad - N)))
    w_blk = w_blk.astype(x.dtype)

    # ---- tile-size / VMEM budgeting ----
    s_pad8 = _round_up(S, 8)
    # Per-row VMEM of one block set: x block + out block + f32 dot temp.
    bytes_per_row = 4 * (K_lane + 2 * N_pad)

    try:
        vmem_cap = int(pltpu.get_tpu_info().vmem_capacity_bytes)
    except Exception:
        vmem_cap = 64 << 20            # conservative fallback: v7x per-TC VMEM

    vmem_target = vmem_cap // 4        # ~32 MiB on v5e/v6e, ~16 MiB on v7x
    ts = vmem_target // (2 * bytes_per_row)          # 2x: double buffering
    ts = max(8, min(2048, (ts // 8) * 8, s_pad8))
    if s_pad8 >= 1024:                 # >=2 grid steps so both v7x TCs work
        ts = min(ts, _round_up(pl.cdiv(s_pad8, 2), 8))

    # Rebalance so ragged-S padding stays small (<~8 rows per grid step).
    n_steps = pl.cdiv(s_pad8, ts)
    ts = _round_up(pl.cdiv(s_pad8, n_steps), 8)
    S_pad = ts * n_steps

    if S_pad != S:
        x2 = jnp.pad(x2, ((0, S_pad - S), (0, 0)))

    w_bytes = 4 * _round_up(K, 8) * N_pad
    vmem_limit = 2 * ts * bytes_per_row + 2 * w_bytes + (4 << 20)
    vmem_limit = max(16 << 20, min(vmem_limit, vmem_cap // 2, 48 << 20))

    out2d = pl.pallas_call(
        _embed_kernel,
        out_shape=jax.ShapeDtypeStruct((S_pad, N_pad), x.dtype),
        grid_spec=pltpu.PrefetchScalarGridSpec(
            num_scalar_prefetch=0,
            grid=(n_steps,),
            in_specs=[
                pl.BlockSpec((ts, K), lambda s: (s, 0)),        # x seq tile
                pl.BlockSpec((K, N_pad), lambda s: (0, 0)),     # full weight
            ],
            out_specs=pl.BlockSpec((ts, N_pad), lambda s: (s, 0)),
        ),
        compiler_params=pltpu.CompilerParams(
            dimension_semantics=("parallel",),     # seq tiles shard on v7x TCs
            vmem_limit_bytes=int(vmem_limit),
        ),
    )(x2, w_blk)

    if S_pad != S or N_pad != N:
        out2d = out2d[:S, :N]          # drop tiny row / lane padding
    return out2d.reshape(S, B, d)      # free view: [S, B*d] is row-major [S, B, d]


class CombinedEmbedding:
    """JAX/Pallas port of the PyTorch CombinedEmbedding module."""

    def __init__(self, d_model: int, is_ems: bool = False, *, key):
        self.d_model = d_model
        self.is_ems = is_ems
        k_w, k_b = jax.random.split(key)
        if is_ems:
            # nn.Conv1d(6, d_model, kernel_size=1): weight [d, 6, 1], bias [d]
            conv_w = jax.random.normal(k_w, (d_model, 6, 1), jnp.float32) * 0.1
            self.w = jnp.transpose(conv_w[:, :, 0], (1, 0))        # [6, d]
            self.b = jax.random.normal(k_b, (d_model,), jnp.float32) * 0.1
        else:
            # nn.Linear(3, d_model): weight [d, 3], bias [d]
            lin_w = jax.random.normal(k_w, (d_model, 3), jnp.float32) * 0.1
            self.w = jnp.transpose(lin_w, (1, 0))                  # [3, d]
            self.b = jax.random.normal(k_b, (d_model,), jnp.float32) * 0.1

    def __call__(self, x):
        """x: [B, S, C_in] (C_in = 6 if is_ems else 3) -> [S, B, d_model]."""
        return combined_embed(x, self.w, self.b)

    def reference(self, x):
        # Mirrors the PyTorch module: pointwise projection then .transpose(0,1).
        out = jnp.einsum("bsc,cd->bsd", x, self.w) + self.b
        return jnp.transpose(out, (1, 0, 2))


if __name__ == "__main__":
    key = jax.random.PRNGKey(0)
    k_buf_p, k_ems_p, k_buf_x, k_ems_x = jax.random.split(key, 4)

    d_model = 32

    # --- buffer branch (Linear(3, d_model)), divisible seq ---
    batch, seq = 2, 8
    emb_buf = CombinedEmbedding(d_model, is_ems=False, key=k_buf_p)
    x_buf = jax.random.normal(k_buf_x, (batch, seq, 3), jnp.float32)
    out_buf = jax.block_until_ready(emb_buf(x_buf))
    ref_buf = emb_buf.reference(x_buf)
    assert out_buf.shape == (seq, batch, d_model)
    assert jnp.allclose(out_buf, ref_buf, atol=1e-5, rtol=1e-5)

    # --- ems branch (Conv1d(6, d_model, kernel_size=1)), ragged seq (pads) ---
    batch, seq = 3, 13
    emb_ems = CombinedEmbedding(d_model, is_ems=True, key=k_ems_p)
    x_ems = jax.random.normal(k_ems_x, (batch, seq, 6), jnp.float32)
    out_ems = jax.block_until_ready(emb_ems(x_ems))
    ref_ems = emb_ems.reference(x_ems)
    assert out_ems.shape == (seq, batch, d_model)
    assert jnp.allclose(out_ems, ref_ems, atol=1e-5, rtol=1e-5)

    print("KERNEL_OK")
</pallas_src>

<mosaic_0001>
module attributes {stable_mosaic.version = 11 : i64} {
  func.func @_embed_kernel(%arg0: i32, %arg1: memref<8x7xf32, #tpu.memory_space<vmem>>, %arg2: memref<7x128xf32, #tpu.memory_space<vmem>>, %arg3: memref<8x128xf32, #tpu.memory_space<vmem>>) attributes {dimension_semantics = [#tpu.dimension_semantics<parallel>], iteration_bounds = array<i64: 1>, scalar_prefetch = 0 : i64, scratch_operands = 0 : i64, tpu.core_type = #tpu.core_type<tc>, window_params = [{transform_indices = @transform_0, window_bounds = array<i64: 8, 7>}, {pipeline_mode = #tpu.pipeline_mode<synchronous>, transform_indices = @transform_1, window_bounds = array<i64: 7, 128>}, {transform_indices = @transform_2, window_bounds = array<i64: 8, 128>}]} {
    %c0 = arith.constant 0 : index
    %c0_0 = arith.constant 0 : index
    %0 = vector.load %arg1[%c0, %c0_0] : memref<8x7xf32, #tpu.memory_space<vmem>>, vector<8x7xf32>
    %c0_1 = arith.constant 0 : index
    %c0_2 = arith.constant 0 : index
    %1 = vector.load %arg2[%c0_1, %c0_2] : memref<7x128xf32, #tpu.memory_space<vmem>>, vector<7x128xf32>
    %cst = arith.constant dense<0.000000e+00> : vector<8x128xf32>
    %2 = tpu.matmul %0, %1, %cst {dimension_numbers = #tpu.dot_dimension_numbers<[1], [0], [0], [1], [0, 0, 1, 1], [], []>} : vector<8x7xf32>, vector<7x128xf32>, vector<8x128xf32> -> vector<8x128xf32>
    %c0_3 = arith.constant 0 : index
    %c0_4 = arith.constant 0 : index
    %3 = vector.load %arg3[%c0_3, %c0_4] : memref<8x128xf32, #tpu.memory_space<vmem>>, vector<8x128xf32>
    tpu.vector_store %arg3[%c0_3, %c0_4], %2 {strides = array<i32>} : memref<8x128xf32, #tpu.memory_space<vmem>>, vector<8x128xf32>,
    return
  }
  func.func @transform_0(%arg0: i32) -> (i32, i32) {
    %c0_i32 = arith.constant 0 : i32
    %c0_i32_0 = arith.constant 0 : i32
    return %arg0, %c0_i32 : i32, i32
  }
  func.func @transform_1(%arg0: i32) -> (i32, i32) {
    %c0_i32 = arith.constant 0 : i32
    %c0_i32_0 = arith.constant 0 : i32
    %c0_i32_1 = arith.constant 0 : i32
    return %c0_i32, %c0_i32_0 : i32, i32
  }
  func.func @transform_2(%arg0: i32) -> (i32, i32) {
    %c0_i32 = arith.constant 0 : i32
    %c0_i32_0 = arith.constant 0 : i32
    return %arg0, %c0_i32 : i32, i32
  }
}

</mosaic_0001>

<llo_original>
// kernel: tpu_custom_call.1
$region0: #{tpu_custom_call.1}
  #allocation0 [shape = 'u32[]', space=smem, size = 0x4, offset = 0x4, fixed_abs, tag = 'smem constant byte address 0x4 - core index']
  #allocation1 [shape = 'u32[144,128]{1,0:T(1,128)}', space=vmem, size = 0x12000, scoped, tag = 'internal scratch']
  %s0 = inlined_call_operand.hbm [shape: f32[8,7], index: 0, kind: input, shape index: {}]
  %s1 = inlined_call_operand.hbm [shape: f32[7,128], index: 1, kind: input, shape index: {}]
  %s2 = inlined_call_operand.hbm [shape: f32[8,128], index: 2, kind: output, shape index: {}]
  %s3 = sld [smem:[#allocation0]]
  $region26: #{tpu_custom_call.1} parent=0
    _
  %s5 = ssub.s32 1, %s3
  %s6 = scalar_select 0, %s5, %s3
  $region1: #{tpu_custom_call.1} parent=0
    #allocation2 [shape = 'u8[4096]{0}', space=vmem, size = 0x1000, scoped, tag = 'input window, operand 0, single buffered']
    #allocation3 [shape = 's32[1]{0}', space=sflag, size = 0x4, scoped, tag = 'scoped memory for tpu_custom_call.1']
    #allocation4 [shape = 's32[1]{0}', space=sflag, size = 0x4, scoped, tag = 'scoped memory for tpu_custom_call.1']
    #allocation5 [shape = 'u8[4096]{0}', space=vmem, size = 0x1000, scoped, tag = 'input window, operand 1, single buffered']
    #allocation6 [shape = 's32[1]{0}', space=sflag, size = 0x4, scoped, tag = 'scoped memory for tpu_custom_call.1']
    #allocation7 [shape = 'u8[4096]{0}', space=vmem, size = 0x1000, scoped, tag = 'output window, operand 0, single buffered']
    %7 = vsyncpa [#allocation3], 0
    %8 = vsyncpa [#allocation6], 0
    %9 = vsyncpa [#allocation4], 0
    // Predicated region
    $region2: #{tpu_custom_call.1} parent=1 // pred_check
      _
    $region3: #{tpu_custom_call.1} parent=1 // pred_check_branch
      %11 = sbr.rel (0) target = $region5
    $region4: #{tpu_custom_call.1} parent=1 // pred_region
      %s13 = ssub.s32 128, 128
      %14 = vsyncadd [#allocation3], %s13
      %s16 = sshll.u32 [#allocation2], 4
      %s17 = int_to_ptr.vmem [resolvable:$true] %s16
      %19 = dma.hbm_to_vmem [thread:$0]  %s0, 128, %s17, [#allocation3]
    $region5: #{tpu_custom_call.1} parent=1 // pred_fallthru
      _
    // Predicated region
    $region6: #{tpu_custom_call.1} parent=1 // pred_check
      _
    $region7: #{tpu_custom_call.1} parent=1 // pred_check_branch
      %21 = sbr.rel (0) target = $region9
    $region8: #{tpu_custom_call.1} parent=1 // pred_region
      %s23 = ssub.s32 128, 128
      %24 = vsyncadd [#allocation6], %s23
      %s26 = sshll.u32 [#allocation5], 4
      %s27 = int_to_ptr.vmem [resolvable:$true] %s26
      %29 = dma.hbm_to_vmem [thread:$0]  %s1, 128, %s27, [#allocation6]
    $region9: #{tpu_custom_call.1} parent=1 // pred_fallthru
      _
    // Predicated region
    $region10: #{tpu_custom_call.1} parent=1 // pred_check
      _
    $region11: #{tpu_custom_call.1} parent=1 // pred_check_branch
      %31 = sbr.rel (0) target = $region13
    $region12: #{tpu_custom_call.1} parent=1 // pred_region
      %32 = dma.done [#allocation3], 128
    $region13: #{tpu_custom_call.1} parent=1 // pred_fallthru
      _
    // Predicated region
    $region14: #{tpu_custom_call.1} parent=1 // pred_check
      _
    $region15: #{tpu_custom_call.1} parent=1 // pred_check_branch
      %34 = sbr.rel (0) target = $region17
    $region16: #{tpu_custom_call.1} parent=1 // pred_region
      %35 = dma.done [#allocation6], 128
    $region17: #{tpu_custom_call.1} parent=1 // pred_fallthru
      _
    %v36 = vld [vmem:[#allocation2] sm:$0xff]
    %v37 = vld [vmem:[#allocation5] sm:$0x7f]
    %vm38 = vcmask 56320
    %v40 = vsel %vm38, %v36, 0
    %vm42 = vcmask 1046528
    %v44 = vsel %vm42, %v37, 0
    %46 = vmatprep.subr.mxu0 0.0
    %47 = vmatpush1.msra.mxu0 %v44
    %48 = vmatprep.subr.mxu0 0.0
    %49 = vmatpush1.msra.mxu0 0.0
    %50 = vmatprep.subr.mxu0 0.0
    %51 = vmatpush1.msra.mxu0 0.0
    %52 = vmatprep.subr.mxu0 0.0
    %53 = vmatpush1.msra.mxu0 0.0
    %54 = vmatprep.subr.mxu0 0.0
    %55 = vmatpush1.msra.mxu0 0.0
    %56 = vmatprep.subr.mxu0 0.0
    %57 = vmatpush1.msra.mxu0 0.0
    %58 = vmatprep.subr.mxu0 0.0
    %59 = vmatpush1.msra.mxu0 0.0
    %60 = vmatprep.subr.mxu0 0.0
    %61 = vmatpush1.msra.mxu0 0.0
    %62 = vmatprep.subr.mxu0 0.0
    %63 = vmatpush1.msra.mxu0 0.0
    %64 = vmatprep.subr.mxu0 0.0
    %65 = vmatpush1.msra.mxu0 0.0
    %66 = vmatprep.subr.mxu0 0.0
    %67 = vmatpush1.msra.mxu0 0.0
    %68 = vmatprep.subr.mxu0 0.0
    %69 = vmatpush1.msra.mxu0 0.0
    %70 = vmatprep.subr.mxu0 0.0
    %71 = vmatpush1.msra.mxu0 0.0
    %72 = vmatprep.subr.mxu0 0.0
    %73 = vmatpush1.msra.mxu0 0.0
    %74 = vmatprep.subr.mxu0 0.0
    %75 = vmatpush1.msra.mxu0 0.0
    %76 = vmatprep.subr.mxu0 0.0
    %77 = vmatpush1.msra.mxu0 0.0
    %78 = vmatprep.subr.mxu0 0.0
    %79 = vmatpush1.msra.mxu0 0.0
    %80 = vmatprep.subr.mxu0 0.0
    %81 = vmatpush1.msra.mxu0 0.0
    %82 = vmatprep.subr.mxu0 0.0
    %83 = vmatpush1.msra.mxu0 0.0
    %84 = vmatprep.subr.mxu0 0.0
    %85 = vmatpush1.msra.mxu0 0.0
    %86 = vmatprep.subr.mxu0 0.0
    %87 = vmatpush1.msra.mxu0 0.0
    %88 = vmatprep.subr.mxu0 0.0
    %89 = vmatpush1.msra.mxu0 0.0
    %90 = vmatprep.subr.mxu0 0.0
    %91 = vmatpush1.msra.mxu0 0.0
    %92 = vmatprep.subr.mxu0 0.0
    %93 = vmatpush1.msra.mxu0 0.0
    %94 = vmatprep.subr.mxu0 0.0
    %95 = vmatpush1.msra.mxu0 0.0
    %96 = vmatprep.subr.mxu0 0.0
    %97 = vmatpush1.msra.mxu0 0.0
    %98 = vmatprep.subr.mxu0 0.0
    %99 = vmatpush1.msra.mxu0 0.0
    %100 = vmatprep.subr.mxu0 0.0
    %101 = vmatpush1.msra.mxu0 0.0
    %102 = vmatprep.subr.mxu0 0.0
    %103 = vmatpush1.msra.mxu0 0.0
    %104 = vmatprep.subr.mxu0 0.0
    %105 = vmatpush1.msra.mxu0 0.0
    %106 = vmatprep.subr.mxu0 0.0
    %107 = vmatpush1.msra.mxu0 0.0
    %108 = vmatprep.subr.mxu0 0.0
    %109 = vmatpush1.msra.mxu0 0.0
    %110 = vmatprep.mubr.f32.mxu0 0.0
    %111 = vmatmul.mubr.f32.gmra.mrb[0].mxu0 %v40
    %v112 = vpop.f32.mrb[0].mxu0
    %v113 = vadd.f32 0.0, %v112
    %v114 = vpop.f32.mrb[0].mxu0
    %115 = vdwg.mxu0
    %116 = vst [vmem:[#allocation7] sm:$0xff] %v113
    // Predicated region
    $region18: #{tpu_custom_call.1} parent=1 // pred_check
      _
    $region19: #{tpu_custom_call.1} parent=1 // pred_check_branch
      %118 = sbr.rel (0) target = $region21
    $region20: #{tpu_custom_call.1} parent=1 // pred_region
      %s120 = ssub.s32 128, 128
      %121 = vsyncadd [#allocation4], %s120
      %s123 = sshll.u32 [#allocation7], 4
      %s124 = int_to_ptr.vmem [resolvable:$true] %s123
      %126 = dma.vmem_to_hbm [thread:$0]  %s124, 128, %s2, [#allocation4]
    $region21: #{tpu_custom_call.1} parent=1 // pred_fallthru
      _
    // Predicated region
    $region22: #{tpu_custom_call.1} parent=1 // pred_check
      _
    $region23: #{tpu_custom_call.1} parent=1 // pred_check_branch
      %128 = sbr.rel (0) target = $region25
    $region24: #{tpu_custom_call.1} parent=1 // pred_region
      %129 = dma.done [#allocation4], 128
    $region25: #{tpu_custom_call.1} parent=1 // pred_fallthru
      _
    %130 = vsyncpa [#allocation3], 1
    %131 = vsyncpa [#allocation6], 1
    %132 = vsyncpa [#allocation4], 1

</llo_original>
